<compile_context>
chip_gen: v7x
topology: tpu7x:2x2x1
jax: 0.10.0
libtpu: 0.0.40
codegen_flags: <defaults>
</compile_context>

<pallas_src>
from functools import partial

import jax
import jax.numpy as jnp
from jax.experimental import pallas as pl
from jax.experimental.pallas import tpu as pltpu


def _round_up(x, m):
    return ((x + m - 1) // m) * m


def critic_kernel(obs_ref, act_ref, w1o_ref, w1a_ref, b1_ref,
                  w2_ref, b2_ref, w3_ref, b3_ref, o_ref, *,
                  act_on_vpu, matmul_dtype):
    """Fused 3-layer MLP on one (TB, .) batch tile. Weights are VMEM-resident
    and already stored in their compute dtype (no per-step weight casts)."""
    md = matmul_dtype

    # ---- Layer 1 (concat fused) + ReLU, f32 accumulation --------------------
    h1 = jnp.dot(obs_ref[...].astype(md), w1o_ref[...],
                 preferred_element_type=jnp.float32)            # (TB, Hp)

    if act_on_vpu:
        # dim_action is tiny: do the action contribution as VPU broadcast-FMAs
        # (keeps layer 1 at a single MXU matmul instead of two).
        act = act_ref[...].astype(jnp.float32)                  # (TB, D_act)
        for j in range(act_ref.shape[1]):                       # static unroll
            h1 = h1 + act[:, j:j + 1] * w1a_ref[j:j + 1, :]
    else:
        # TODO(synk): for large dim_action, fuse into one matmul via a VMEM
        # scratch concat instead of a second MXU matmul.
        h1 = h1 + jnp.dot(act_ref[...].astype(md), w1a_ref[...],
                          preferred_element_type=jnp.float32)

    h1 = jnp.maximum(h1 + b1_ref[...], 0.0)                     # (TB, Hp) f32

    # ---- Layer 2 + ReLU ------------------------------------------------------
    h2 = jnp.dot(h1.astype(md), w2_ref[...],
                 preferred_element_type=jnp.float32) + b2_ref[...]
    h2 = jnp.maximum(h2, 0.0)                                   # (TB, Hp) f32

    # ---- Layer 3 (single output column): VPU multiply + XLU lane reduction --
    out = jnp.sum(h2 * w3_ref[...], axis=-1, keepdims=True) + b3_ref[...]
    o_ref[...] = out.astype(o_ref.dtype)                        # (TB, 1)


def critic_forward(obs, action, params, *, block_b=512,
                   matmul_dtype=jnp.bfloat16):
    """Wrapper: stream the batch, keep (pre-cast) weights VMEM-resident."""
    w1_obs, w1_act, b1, w2, b2, w3_row, b3 = params
    B, d_obs = obs.shape
    d_act = action.shape[1]
    hp = w2.shape[1]                       # lane-padded hidden size

    act_on_vpu = d_act <= 8

    obs = obs.astype(jnp.float32)
    action = action.astype(jnp.float32)

    # Pre-cast the MXU-resident weights here (tiny one-off op on the weights,
    # not a pass over the streamed activations). Biases / the layer-3 row stay
    # f32 since they only feed f32 VPU adds / the lane reduction.
    w1o_k = w1_obs.astype(matmul_dtype)
    w1a_k = w1_act.astype(jnp.float32 if act_on_vpu else matmul_dtype)
    w2_k = w2.astype(matmul_dtype)
    b1 = b1.astype(jnp.float32)
    b2 = b2.astype(jnp.float32)
    w3_row = w3_row.astype(jnp.float32)
    b3 = b3.astype(jnp.float32)

    # Batch tile: multiple of 8 sublanes; sized so that for large B the grid
    # has >= 2 steps (v7x megacore sharding), capped at block_b.
    tb = int(min(_round_up(block_b, 8),
                 max(8, _round_up(pl.cdiv(B, 2), 8))))
    grid = (pl.cdiv(B, tb),)   # no jnp.pad: Pallas masks the ragged tail tile

    def streamed(d):                               # batch-streamed operands
        return pl.BlockSpec((tb, d), lambda i: (i, 0))

    def resident(shape):                           # same block every grid step
        return pl.BlockSpec(shape, lambda i: (0, 0))

    # Explicit VMEM budget (matters for v5e's 16 MiB scoped default and
    # v7x's 64 MiB physical VMEM).
    w_itm = jnp.dtype(matmul_dtype).itemsize
    est = (2 * tb * (d_obs + d_act) * 4                       # streamed in
           + 2 * tb * 4                                       # streamed out
           + 2 * (d_obs * hp * w_itm + d_act * hp * 4
                  + hp * hp * w_itm + 3 * hp * 4 + 4)         # weights/biases
           + 4 * tb * hp * 4)                                 # h1/h2 + headroom
    vmem_limit = int(min(64 << 20, max(32 << 20, 2 * est)))

    out = pl.pallas_call(
        partial(critic_kernel, act_on_vpu=act_on_vpu, matmul_dtype=matmul_dtype),
        out_shape=jax.ShapeDtypeStruct((B, 1), jnp.float32),
        grid=grid,
        in_specs=[
            streamed(d_obs),            # obs
            streamed(d_act),            # action
            resident((d_obs, hp)),      # W1_obs  (matmul dtype)
            resident((d_act, hp)),      # W1_act  (f32 when used on the VPU)
            resident((1, hp)),          # b1
            resident((hp, hp)),         # W2      (matmul dtype)
            resident((1, hp)),          # b2
            resident((1, hp)),          # W3 row
            resident((1, 1)),           # b3
        ],
        out_specs=pl.BlockSpec((tb, 1), lambda i: (i, 0)),
        compiler_params=pltpu.CompilerParams(
            dimension_semantics=("parallel",),
            vmem_limit_bytes=vmem_limit,
        ),
    )(obs, action, w1o_k, w1a_k, b1, w2_k, b2, w3_row, b3)

    return out


def init_params(key, dim_obs, dim_action, hidden_size, lane=128):
    """Deterministic init mirroring the PyTorch module.
    Layers 1/2: default nn.Linear init (uniform +/- 1/sqrt(fan_in)).
    Layer 3: uniform(-0.003, 0.003) for weight and bias.
    The hidden dim is zero-padded to a multiple of 128 lanes (relu(0)=0 in the
    padded lanes and padded W2/W3 entries are zero, so results are unchanged).
    W1 is returned split into (dim_obs, Hp) / (dim_action, Hp); biases are
    pre-reshaped to (1, Hp); W3 is a (1, Hp) row."""
    d_in = dim_obs + dim_action
    hp = _round_up(hidden_size, lane)
    k1, k2, k3, k4, k5, k6 = jax.random.split(key, 6)

    lim1 = 1.0 / jnp.sqrt(d_in)
    w1 = jax.random.uniform(k1, (d_in, hidden_size), jnp.float32, -lim1, lim1)
    b1 = jax.random.uniform(k2, (1, hidden_size), jnp.float32, -lim1, lim1)

    lim2 = 1.0 / jnp.sqrt(hidden_size)
    w2 = jax.random.uniform(k3, (hidden_size, hidden_size), jnp.float32, -lim2, lim2)
    b2 = jax.random.uniform(k4, (1, hidden_size), jnp.float32, -lim2, lim2)

    init_w = 0.003
    w3 = jax.random.uniform(k5, (1, hidden_size), jnp.float32, -init_w, init_w)
    b3 = jax.random.uniform(k6, (1, 1), jnp.float32, -init_w, init_w)

    ph = hp - hidden_size
    w1 = jnp.pad(w1, ((0, 0), (0, ph)))
    b1 = jnp.pad(b1, ((0, 0), (0, ph)))
    w2 = jnp.pad(w2, ((0, ph), (0, ph)))
    b2 = jnp.pad(b2, ((0, 0), (0, ph)))
    w3 = jnp.pad(w3, ((0, 0), (0, ph)))

    w1_obs, w1_act = w1[:dim_obs], w1[dim_obs:]
    return (w1_obs, w1_act, b1, w2, b2, w3, b3)


if __name__ == "__main__":
    # Small shapes consistent with the module's forward.
    batch, dim_obs, dim_action, hidden = 2, 16, 4, 32

    key = jax.random.PRNGKey(0)
    k_obs, k_act, k_par = jax.random.split(key, 3)
    obs = jax.random.normal(k_obs, (batch, dim_obs), jnp.float32)
    action = jax.random.normal(k_act, (batch, dim_action), jnp.float32)
    params = init_params(k_par, dim_obs, dim_action, hidden)

    # Default fast path (bf16 MXU operands, f32 accumulation).
    out_bf16 = critic_forward(obs, action, params)
    # f32 path for a tight check against the reference.
    out_f32 = critic_forward(obs, action, params, matmul_dtype=jnp.float32)
    jax.block_until_ready((out_bf16, out_f32))

    # Pure-JAX reference of the same math (f32 throughout; padded params give
    # identical results to the unpadded module).
    w1_obs, w1_act, b1, w2, b2, w3_row, b3 = params
    x = jnp.concatenate([obs, action], axis=1)
    w1 = jnp.concatenate([w1_obs, w1_act], axis=0)
    ref = jnp.maximum(x @ w1 + b1, 0.0)
    ref = jnp.maximum(ref @ w2 + b2, 0.0)
    ref = ref @ w3_row.T + b3

    assert out_f32.shape == (batch, 1) and out_bf16.shape == (batch, 1)
    assert jnp.allclose(out_f32, ref, atol=1e-4, rtol=1e-4)
    assert jnp.allclose(out_bf16, ref, atol=5e-3, rtol=5e-2)

    print("KERNEL_OK")
</pallas_src>

<mosaic_0001>
module attributes {stable_mosaic.version = 11 : i64} {
  func.func @critic_kernel(%arg0: i32, %arg1: memref<8x16xf32, #tpu.memory_space<vmem>>, %arg2: memref<8x4xf32, #tpu.memory_space<vmem>>, %arg3: memref<16x128xbf16, #tpu.memory_space<vmem>>, %arg4: memref<4x128xf32, #tpu.memory_space<vmem>>, %arg5: memref<1x128xf32, #tpu.memory_space<vmem>>, %arg6: memref<128x128xbf16, #tpu.memory_space<vmem>>, %arg7: memref<1x128xf32, #tpu.memory_space<vmem>>, %arg8: memref<1x128xf32, #tpu.memory_space<vmem>>, %arg9: memref<1x1xf32, #tpu.memory_space<vmem>>, %arg10: memref<8x1xf32, #tpu.memory_space<vmem>>) attributes {dimension_semantics = [#tpu.dimension_semantics<parallel>], iteration_bounds = array<i64: 1>, scalar_prefetch = 0 : i64, scratch_operands = 0 : i64, tpu.core_type = #tpu.core_type<tc>, window_params = [{transform_indices = @transform_0, window_bounds = array<i64: 8, 16>}, {transform_indices = @transform_1, window_bounds = array<i64: 8, 4>}, {pipeline_mode = #tpu.pipeline_mode<synchronous>, transform_indices = @transform_2, window_bounds = array<i64: 16, 128>}, {pipeline_mode = #tpu.pipeline_mode<synchronous>, transform_indices = @transform_3, window_bounds = array<i64: 4, 128>}, {pipeline_mode = #tpu.pipeline_mode<synchronous>, transform_indices = @transform_4, window_bounds = array<i64: 1, 128>}, {pipeline_mode = #tpu.pipeline_mode<synchronous>, transform_indices = @transform_5, window_bounds = array<i64: 128, 128>}, {pipeline_mode = #tpu.pipeline_mode<synchronous>, transform_indices = @transform_6, window_bounds = array<i64: 1, 128>}, {pipeline_mode = #tpu.pipeline_mode<synchronous>, transform_indices = @transform_7, window_bounds = array<i64: 1, 128>}, {pipeline_mode = #tpu.pipeline_mode<synchronous>, transform_indices = @transform_8, window_bounds = array<i64: 1, 1>}, {transform_indices = @transform_9, window_bounds = array<i64: 8, 1>}]} {
    %c0 = arith.constant 0 : index
    %c0_0 = arith.constant 0 : index
    %0 = vector.load %arg1[%c0, %c0_0] : memref<8x16xf32, #tpu.memory_space<vmem>>, vector<8x16xf32>
    %1 = arith.truncf %0 : vector<8x16xf32> to vector<8x16xbf16>
    %c0_1 = arith.constant 0 : index
    %c0_2 = arith.constant 0 : index
    %2 = vector.load %arg3[%c0_1, %c0_2] : memref<16x128xbf16, #tpu.memory_space<vmem>>, vector<16x128xbf16>
    %cst = arith.constant dense<0.000000e+00> : vector<8x128xf32>
    %3 = tpu.matmul %1, %2, %cst {dimension_numbers = #tpu.dot_dimension_numbers<[1], [0], [0], [1], [0, 0, 1, 1], [], []>} : vector<8x16xbf16>, vector<16x128xbf16>, vector<8x128xf32> -> vector<8x128xf32>
    %c0_3 = arith.constant 0 : index
    %c0_4 = arith.constant 0 : index
    %4 = vector.load %arg2[%c0_3, %c0_4] : memref<8x4xf32, #tpu.memory_space<vmem>>, vector<8x4xf32>
    %5 = vector.extract_strided_slice %4 {offsets = [0, 0], sizes = [8, 1], strides = [1, 1]} : vector<8x4xf32> to vector<8x1xf32>
    %c0_5 = arith.constant 0 : index
    %c0_6 = arith.constant 0 : index
    %6 = vector.load %arg4[%c0_5, %c0_6] : memref<4x128xf32, #tpu.memory_space<vmem>>, vector<1x128xf32>
    %7 = vector.broadcast %5 : vector<8x1xf32> to vector<8x128xf32>
    %8 = vector.broadcast %6 : vector<1x128xf32> to vector<8x128xf32>
    %9 = arith.mulf %7, %8 : vector<8x128xf32>
    %10 = arith.addf %3, %9 : vector<8x128xf32>
    %11 = vector.extract_strided_slice %4 {offsets = [0, 1], sizes = [8, 1], strides = [1, 1]} : vector<8x4xf32> to vector<8x1xf32>
    %c1 = arith.constant 1 : index
    %c0_7 = arith.constant 0 : index
    %12 = vector.load %arg4[%c1, %c0_7] : memref<4x128xf32, #tpu.memory_space<vmem>>, vector<1x128xf32>
    %13 = vector.broadcast %11 : vector<8x1xf32> to vector<8x128xf32>
    %14 = vector.broadcast %12 : vector<1x128xf32> to vector<8x128xf32>
    %15 = arith.mulf %13, %14 : vector<8x128xf32>
    %16 = arith.addf %10, %15 : vector<8x128xf32>
    %17 = vector.extract_strided_slice %4 {offsets = [0, 2], sizes = [8, 1], strides = [1, 1]} : vector<8x4xf32> to vector<8x1xf32>
    %c2 = arith.constant 2 : index
    %c0_8 = arith.constant 0 : index
    %18 = vector.load %arg4[%c2, %c0_8] : memref<4x128xf32, #tpu.memory_space<vmem>>, vector<1x128xf32>
    %19 = vector.broadcast %17 : vector<8x1xf32> to vector<8x128xf32>
    %20 = vector.broadcast %18 : vector<1x128xf32> to vector<8x128xf32>
    %21 = arith.mulf %19, %20 : vector<8x128xf32>
    %22 = arith.addf %16, %21 : vector<8x128xf32>
    %23 = vector.extract_strided_slice %4 {offsets = [0, 3], sizes = [8, 1], strides = [1, 1]} : vector<8x4xf32> to vector<8x1xf32>
    %c3 = arith.constant 3 : index
    %c0_9 = arith.constant 0 : index
    %24 = vector.load %arg4[%c3, %c0_9] : memref<4x128xf32, #tpu.memory_space<vmem>>, vector<1x128xf32>
    %25 = vector.broadcast %23 : vector<8x1xf32> to vector<8x128xf32>
    %26 = vector.broadcast %24 : vector<1x128xf32> to vector<8x128xf32>
    %27 = arith.mulf %25, %26 : vector<8x128xf32>
    %28 = arith.addf %22, %27 : vector<8x128xf32>
    %c0_10 = arith.constant 0 : index
    %c0_11 = arith.constant 0 : index
    %29 = vector.load %arg5[%c0_10, %c0_11] : memref<1x128xf32, #tpu.memory_space<vmem>>, vector<1x128xf32>
    %30 = vector.broadcast %29 : vector<1x128xf32> to vector<8x128xf32>
    %31 = arith.addf %28, %30 : vector<8x128xf32>
    %cst_12 = arith.constant 0.000000e+00 : f32
    %32 = vector.broadcast %cst_12 : f32 to vector<8x128xf32>
    %33 = arith.maximumf %31, %32 : vector<8x128xf32>
    %34 = arith.truncf %33 : vector<8x128xf32> to vector<8x128xbf16>
    %c0_13 = arith.constant 0 : index
    %c0_14 = arith.constant 0 : index
    %35 = vector.load %arg6[%c0_13, %c0_14] : memref<128x128xbf16, #tpu.memory_space<vmem>>, vector<128x128xbf16>
    %cst_15 = arith.constant dense<0.000000e+00> : vector<8x128xf32>
    %36 = tpu.matmul %34, %35, %cst_15 {dimension_numbers = #tpu.dot_dimension_numbers<[1], [0], [0], [1], [0, 0, 1, 1], [], []>} : vector<8x128xbf16>, vector<128x128xbf16>, vector<8x128xf32> -> vector<8x128xf32>
    %c0_16 = arith.constant 0 : index
    %c0_17 = arith.constant 0 : index
    %37 = vector.load %arg7[%c0_16, %c0_17] : memref<1x128xf32, #tpu.memory_space<vmem>>, vector<1x128xf32>
    %38 = vector.broadcast %37 : vector<1x128xf32> to vector<8x128xf32>
    %39 = arith.addf %36, %38 : vector<8x128xf32>
    %cst_18 = arith.constant 0.000000e+00 : f32
    %40 = vector.broadcast %cst_18 : f32 to vector<8x128xf32>
    %41 = arith.maximumf %39, %40 : vector<8x128xf32>
    %c0_19 = arith.constant 0 : index
    %c0_20 = arith.constant 0 : index
    %42 = vector.load %arg8[%c0_19, %c0_20] : memref<1x128xf32, #tpu.memory_space<vmem>>, vector<1x128xf32>
    %43 = vector.broadcast %42 : vector<1x128xf32> to vector<8x128xf32>
    %44 = arith.mulf %41, %43 : vector<8x128xf32>
    %cst_21 = arith.constant dense<0.000000e+00> : vector<8xf32>
    %45 = vector.multi_reduction <add>, %44, %cst_21 [1] : vector<8x128xf32> to vector<8xf32>
    %46 = vector.shape_cast %45 : vector<8xf32> to vector<8x1xf32>
    %c0_22 = arith.constant 0 : index
    %c0_23 = arith.constant 0 : index
    %47 = vector.load %arg9[%c0_22, %c0_23] : memref<1x1xf32, #tpu.memory_space<vmem>>, vector<1x1xf32>
    %48 = vector.broadcast %47 : vector<1x1xf32> to vector<8x1xf32>
    %49 = arith.addf %46, %48 : vector<8x1xf32>
    %c0_24 = arith.constant 0 : index
    %c0_25 = arith.constant 0 : index
    %50 = vector.load %arg10[%c0_24, %c0_25] : memref<8x1xf32, #tpu.memory_space<vmem>>, vector<8x1xf32>
    tpu.vector_store %arg10[%c0_24, %c0_25], %49 {strides = array<i32>} : memref<8x1xf32, #tpu.memory_space<vmem>>, vector<8x1xf32>,
    return
  }
  func.func @transform_0(%arg0: i32) -> (i32, i32) {
    %c0_i32 = arith.constant 0 : i32
    %c0_i32_0 = arith.constant 0 : i32
    return %arg0, %c0_i32 : i32, i32
  }
  func.func @transform_1(%arg0: i32) -> (i32, i32) {
    %c0_i32 = arith.constant 0 : i32
    %c0_i32_0 = arith.constant 0 : i32
    return %arg0, %c0_i32 : i32, i32
  }
  func.func @transform_2(%arg0: i32) -> (i32, i32) {
    %c0_i32 = arith.constant 0 : i32
    %c0_i32_0 = arith.constant 0 : i32
    %c0_i32_1 = arith.constant 0 : i32
    return %c0_i32, %c0_i32_0 : i32, i32
  }
  func.func @transform_3(%arg0: i32) -> (i32, i32) {
    %c0_i32 = arith.constant 0 : i32
    %c0_i32_0 = arith.constant 0 : i32
    %c0_i32_1 = arith.constant 0 : i32
    return %c0_i32, %c0_i32_0 : i32, i32
  }
  func.func @transform_4(%arg0: i32) -> (i32, i32) {
    %c0_i32 = arith.constant 0 : i32
    %c0_i32_0 = arith.constant 0 : i32
    %c0_i32_1 = arith.constant 0 : i32
    return %c0_i32, %c0_i32_0 : i32, i32
  }
  func.func @transform_5(%arg0: i32) -> (i32, i32) {
    %c0_i32 = arith.constant 0 : i32
    %c0_i32_0 = arith.constant 0 : i32
    %c0_i32_1 = arith.constant 0 : i32
    return %c0_i32, %c0_i32_0 : i32, i32
  }
  func.func @transform_6(%arg0: i32) -> (i32, i32) {
    %c0_i32 = arith.constant 0 : i32
    %c0_i32_0 = arith.constant 0 : i32
    %c0_i32_1 = arith.constant 0 : i32
    return %c0_i32, %c0_i32_0 : i32, i32
  }
  func.func @transform_7(%arg0: i32) -> (i32, i32) {
    %c0_i32 = arith.constant 0 : i32
    %c0_i32_0 = arith.constant 0 : i32
    %c0_i32_1 = arith.constant 0 : i32
    return %c0_i32, %c0_i32_0 : i32, i32
  }
  func.func @transform_8(%arg0: i32) -> (i32, i32) {
    %c0_i32 = arith.constant 0 : i32
    %c0_i32_0 = arith.constant 0 : i32
    %c0_i32_1 = arith.constant 0 : i32
    return %c0_i32, %c0_i32_0 : i32, i32
  }
  func.func @transform_9(%arg0: i32) -> (i32, i32) {
    %c0_i32 = arith.constant 0 : i32
    %c0_i32_0 = arith.constant 0 : i32
    return %arg0, %c0_i32 : i32, i32
  }
}

</mosaic_0001>

<llo_original>
// kernel: tpu_custom_call.1
$region0: #{tpu_custom_call.1}
  #allocation0 [shape = 'u32[]', space=smem, size = 0x4, offset = 0x4, fixed_abs, tag = 'smem constant byte address 0x4 - core index']
  #allocation1 [shape = 'u32[144,128]{1,0:T(1,128)}', space=vmem, size = 0x12000, scoped, tag = 'internal scratch']
  #allocation2 [shape = 'f32[1,1]{1,0:T(1,128)S(1)}', space=vmem, size = 0x200, scoped, tag = 'scoped memory for tpu_custom_call.1']
  %s0 = inlined_call_operand.vmem [shape: f32[2,16], index: 0, kind: input, shape index: {}]
  %s1 = inlined_call_operand.hbm [shape: f32[2,4], index: 1, kind: input, shape index: {}]
  %s2 = inlined_call_operand.vmem [shape: bf16[16,128], index: 2, kind: input, shape index: {}]
  %s3 = inlined_call_operand.vmem [shape: f32[4,128], index: 3, kind: input, shape index: {}]
  %s4 = inlined_call_operand.vmem [shape: f32[1,128], index: 4, kind: input, shape index: {}]
  %s5 = inlined_call_operand.hbm [shape: bf16[128,128], index: 5, kind: input, shape index: {}]
  %s6 = inlined_call_operand.vmem [shape: f32[1,128], index: 6, kind: input, shape index: {}]
  %s7 = inlined_call_operand.vmem [shape: f32[1,128], index: 7, kind: input, shape index: {}]
  %s8 = inlined_call_operand.<no memory space> [shape: f32[1,1], index: 8, kind: input, shape index: {}]
  %s9 = inlined_call_operand.vmem [shape: f32[2,1], index: 9, kind: output, shape index: {}]
  %s10 = sld [smem:[#allocation0]]
  $region84: #{tpu_custom_call.1} parent=0
    _
  %s12 = ssub.s32 1, %s10
  %s13 = scalar_select 0, %s12, %s10
  %v14 = vstv %s8
  %15 = vst [vmem:[#allocation2] sm:$0x1] %v14
  $region1: #{tpu_custom_call.1} parent=0
    #allocation3 [shape = 'u8[4096]{0}', space=vmem, size = 0x1000, scoped, tag = 'input window, operand 1, single buffered']
    #allocation4 [shape = 's32[1]{0}', space=sflag, size = 0x4, scoped, tag = 'scoped memory for tpu_custom_call.1']
    #allocation5 [shape = 'u8[32768]{0}', space=vmem, size = 0x8000, scoped, tag = 'input window, operand 5, single buffered']
    #allocation6 [shape = 's32[1]{0}', space=sflag, size = 0x4, scoped, tag = 'scoped memory for tpu_custom_call.1']
    #allocation7 [shape = 'u8[4096]{0}', space=vmem, size = 0x1000, scoped, tag = 'output window, operand 0, single buffered']
    %16 = vsyncpa [#allocation4], 0
    %17 = vsyncpa [#allocation6], 0
    // Predicated region
    $region2: #{tpu_custom_call.1} parent=1 // pred_check
      _
    $region3: #{tpu_custom_call.1} parent=1 // pred_check_branch
      %19 = sbr.rel (0) target = $region5
    $region4: #{tpu_custom_call.1} parent=1 // pred_region
      _
    $region5: #{tpu_custom_call.1} parent=1 // pred_fallthru
      _
    // Predicated region
    $region6: #{tpu_custom_call.1} parent=1 // pred_check
      _
    $region7: #{tpu_custom_call.1} parent=1 // pred_check_branch
      %21 = sbr.rel (0) target = $region9
    $region8: #{tpu_custom_call.1} parent=1 // pred_region
      %s23 = ssub.s32 128, 32
      %24 = vsyncadd [#allocation4], %s23
      %s25 = sshll.u32 [#allocation3], 4
      %s26 = int_to_ptr.vmem [resolvable:$true] %s25
      %31 = dma.hbm_to_vmem [thread:$0]  %s1, 32, %s26, [#allocation4], 32, 32, 2
    $region9: #{tpu_custom_call.1} parent=1 // pred_fallthru
      _
    // Predicated region
    $region10: #{tpu_custom_call.1} parent=1 // pred_check
      _
    $region11: #{tpu_custom_call.1} parent=1 // pred_check_branch
      %33 = sbr.rel (0) target = $region13
    $region12: #{tpu_custom_call.1} parent=1 // pred_region
      _
    $region13: #{tpu_custom_call.1} parent=1 // pred_fallthru
      _
    // Predicated region
    $region14: #{tpu_custom_call.1} parent=1 // pred_check
      _
    $region15: #{tpu_custom_call.1} parent=1 // pred_check_branch
      %35 = sbr.rel (0) target = $region17
    $region16: #{tpu_custom_call.1} parent=1 // pred_region
      _
    $region17: #{tpu_custom_call.1} parent=1 // pred_fallthru
      _
    // Predicated region
    $region18: #{tpu_custom_call.1} parent=1 // pred_check
      _
    $region19: #{tpu_custom_call.1} parent=1 // pred_check_branch
      %37 = sbr.rel (0) target = $region21
    $region20: #{tpu_custom_call.1} parent=1 // pred_region
      _
    $region21: #{tpu_custom_call.1} parent=1 // pred_fallthru
      _
    // Predicated region
    $region22: #{tpu_custom_call.1} parent=1 // pred_check
      _
    $region23: #{tpu_custom_call.1} parent=1 // pred_check_branch
      %39 = sbr.rel (0) target = $region25
    $region24: #{tpu_custom_call.1} parent=1 // pred_region
      %s41 = ssub.s32 1024, 1024
      %42 = vsyncadd [#allocation6], %s41
      %s43 = sshll.u32 [#allocation5], 4
      %s44 = int_to_ptr.vmem [resolvable:$true] %s43
      %49 = dma.hbm_to_vmem [thread:$0]  %s5, 1024, %s44, [#allocation6], 64, 64, 4
    $region25: #{tpu_custom_call.1} parent=1 // pred_fallthru
      _
    // Predicated region
    $region26: #{tpu_custom_call.1} parent=1 // pred_check
      _
    $region27: #{tpu_custom_call.1} parent=1 // pred_check_branch
      %51 = sbr.rel (0) target = $region29
    $region28: #{tpu_custom_call.1} parent=1 // pred_region
      _
    $region29: #{tpu_custom_call.1} parent=1 // pred_fallthru
      _
    // Predicated region
    $region30: #{tpu_custom_call.1} parent=1 // pred_check
      _
    $region31: #{tpu_custom_call.1} parent=1 // pred_check_branch
      %53 = sbr.rel (0) target = $region33
    $region32: #{tpu_custom_call.1} parent=1 // pred_region
      _
    $region33: #{tpu_custom_call.1} parent=1 // pred_fallthru
      _
    // Predicated region
    $region34: #{tpu_custom_call.1} parent=1 // pred_check
      _
    $region35: #{tpu_custom_call.1} parent=1 // pred_check_branch
      %55 = sbr.rel (0) target = $region37
    $region36: #{tpu_custom_call.1} parent=1 // pred_region
      _
    $region37: #{tpu_custom_call.1} parent=1 // pred_fallthru
      _
    // Predicated region
    $region38: #{tpu_custom_call.1} parent=1 // pred_check
      _
    $region39: #{tpu_custom_call.1} parent=1 // pred_check_branch
      %57 = sbr.rel (0) target = $region41
    $region40: #{tpu_custom_call.1} parent=1 // pred_region
      %58 = dma.done [#allocation4], 128
    $region41: #{tpu_custom_call.1} parent=1 // pred_fallthru
      _
    // Predicated region
    $region42: #{tpu_custom_call.1} parent=1 // pred_check
      _
    $region43: #{tpu_custom_call.1} parent=1 // pred_check_branch
      %60 = sbr.rel (0) target = $region45
    $region44: #{tpu_custom_call.1} parent=1 // pred_region
      %61 = dma.done [#allocation6], 1024
    $region45: #{tpu_custom_call.1} parent=1 // pred_fallthru
      _
    %v63 = vld [vmem:[%s0] sm:$0xff]
    %v64 = vpack.c.bf16 %v63, %v63
    %v65 = vld [vmem:[%s2] sm:$0xf]
    %v66 = vld [vmem:[%s2 + $0x4] sm:$0xf]
    %v67 = vld [vmem:[#allocation3] sm:$0xff]
    %v68 = vld [vmem:[%s3] sm:$0x1]
    %70 = vset.pattern.permute.xlu0 0
    %71 = vperm.xlu0 %70, %v67
    %v72 = vpop.permute.xlu0 %71
    %v74 = vlaneseq
    %v75 = vshrl.u32 %v74, 7
    %v76 = vsub.s32 0, %v75
    %v77 = vrot.slane %v68, %v76
    %v78 = vmul.f32 %v72, %v77
    %v81 = vunpack.c.l.b16 %v65
    %v82 = vunpack.c.l.b16 %v66
    %v83 = vpack.c.b16 %v82, %v81
    %vm85 = vcmask 130048
    %v87 = vsel %vm85, %v64, 0
    %89 = vmatprep.subr.bf16.mxu0 0
    %90 = vmatpush1.bf16.msra.mxu0 %v83
    %91 = vmatprep.subr.bf16.mxu0 0
    %92 = vmatpush1.bf16.msra.mxu0 0
    %93 = vmatprep.subr.bf16.mxu0 0
    %94 = vmatpush1.bf16.msra.mxu0 0
    %95 = vmatprep.subr.bf16.mxu0 0
    %96 = vmatpush1.bf16.msra.mxu0 0
    %97 = vmatprep.subr.bf16.mxu0 0
    %98 = vmatpush1.bf16.msra.mxu0 0
    %99 = vmatprep.subr.bf16.mxu0 0
    %100 = vmatpush1.bf16.msra.mxu0 0
    %101 = vmatprep.subr.bf16.mxu0 0
    %102 = vmatpush1.bf16.msra.mxu0 0
    %103 = vmatprep.subr.bf16.mxu0 0
    %104 = vmatpush1.bf16.msra.mxu0 0
    %105 = vmatprep.subr.bf16.mxu0 0
    %106 = vmatpush1.bf16.msra.mxu0 0
    %107 = vmatprep.subr.bf16.mxu0 0
    %108 = vmatpush1.bf16.msra.mxu0 0
    %109 = vmatprep.subr.bf16.mxu0 0
    %110 = vmatpush1.bf16.msra.mxu0 0
    %111 = vmatprep.subr.bf16.mxu0 0
    %112 = vmatpush1.bf16.msra.mxu0 0
    %113 = vmatprep.subr.bf16.mxu0 0
    %114 = vmatpush1.bf16.msra.mxu0 0
    %115 = vmatprep.subr.bf16.mxu0 0
    %116 = vmatpush1.bf16.msra.mxu0 0
    %117 = vmatprep.subr.bf16.mxu0 0
    %118 = vmatpush1.bf16.msra.mxu0 0
    %119 = vmatprep.subr.bf16.mxu0 0
    %120 = vmatpush1.bf16.msra.mxu0 0
    %121 = vmatprep.mubr.bf16.mxu0 0
    %122 = vmatmul.mubr.bf16.gmra.mrb[0].mxu0 %v87
    %v123 = vpop.f32.mrb[0].mxu0
    %v124 = vadd.f32 %v78, %v123
    %v125 = vpop.f32.mrb[0].mxu0
    %v126 = vpop.f32.mrb[0].mxu0
    %v127 = vpop.f32.mrb[0].mxu0
    %128 = vdwg.mxu0
    %v129 = vld [vmem:[%s3 + $0x1] sm:$0x1]
    %130 = vset.pattern.permute.xlu0 1
    %131 = vperm.xlu0 %130, %v67
    %v132 = vpop.permute.xlu0 %131
    %v134 = vlaneseq
    %v135 = vshrl.u32 %v134, 7
    %v136 = vsub.s32 0, %v135
    %v137 = vrot.slane %v129, %v136
    %v138 = vmul.f32 %v132, %v137
    %v139 = vadd.f32 %v124, %v138
    %v140 = vld [vmem:[%s3 + $0x2] sm:$0x1]
    %141 = vset.pattern.permute.xlu0 2
    %142 = vperm.xlu0 %141, %v67
    %v143 = vpop.permute.xlu0 %142
    %v145 = vlaneseq
    %v146 = vshrl.u32 %v145, 7
    %v147 = vsub.s32 0, %v146
    %v148 = vrot.slane %v140, %v147
    %v149 = vmul.f32 %v143, %v148
    %v150 = vadd.f32 %v139, %v149
    %v151 = vld [vmem:[%s3 + $0x3] sm:$0x1]
    %152 = vset.pattern.permute.xlu0 3
    %153 = vperm.xlu0 %152, %v67
    %v154 = vpop.permute.xlu0 %153
    %v156 = vlaneseq
    %v157 = vshrl.u32 %v156, 7
    %v158 = vsub.s32 0, %v157
    %v159 = vrot.slane %v151, %v158
    %v160 = vmul.f32 %v154, %v159
    %v161 = vadd.f32 %v150, %v160
    %v162 = vld [vmem:[%s4] sm:$0x1]
    %v164 = vlaneseq
    %v165 = vshrl.u32 %v164, 7
    %v166 = vsub.s32 0, %v165
    %v167 = vrot.slane %v162, %v166
    %v169 = vadd.f32 %v161, %v167
    %v170 = vmax.f32 %v169, 0.0
    %v171 = vpack.c.bf16 %v170, %v170
    %v172 = vld [vmem:[#allocation5] sm:$0xf]
    %v173 = vld [vmem:[#allocation5 + $0x4] sm:$0xf]
    %v174 = vld [vmem:[#allocation5 + $0x8] sm:$0xf]
    %v175 = vld [vmem:[#allocation5 + $0xc] sm:$0xf]
    %v176 = vld [vmem:[#allocation5 + $0x10] sm:$0xf]
    %v177 = vld [vmem:[#allocation5 + $0x14] sm:$0xf]
    %v178 = vld [vmem:[#allocation5 + $0x18] sm:$0xf]
    %v179 = vld [vmem:[#allocation5 + $0x1c] sm:$0xf]
    %v180 = vld [vmem:[#allocation5 + $0x20] sm:$0xf]
    %v181 = vld [vmem:[#allocation5 + $0x24] sm:$0xf]
    %v182 = vld [vmem:[#allocation5 + $0x28] sm:$0xf]
    %v183 = vld [vmem:[#allocation5 + $0x2c] sm:$0xf]
    %v184 = vld [vmem:[#allocation5 + $0x30] sm:$0xf]
    %v185 = vld [vmem:[#allocation5 + $0x34] sm:$0xf]
    %v186 = vld [vmem:[#allocation5 + $0x38] sm:$0xf]
    %v187 = vld [vmem:[#allocation5 + $0x3c] sm:$0xf]
    %v188 = vld [vmem:[%s6] sm:$0x1]
    %v190 = vlaneseq
    %v191 = vshrl.u32 %v190, 7
    %v192 = vsub.s32 0, %v191
    %v193 = vrot.slane %v188, %v192
    %v211 = vunpack.c.l.b16 %v172
    %v212 = vunpack.c.l.b16 %v173
    %v213 = vunpack.c.l.b16 %v174
    %v214 = vunpack.c.l.b16 %v175
    %v215 = vunpack.c.l.b16 %v176
    %v216 = vunpack.c.l.b16 %v177
    %v217 = vunpack.c.l.b16 %v178
    %v218 = vunpack.c.l.b16 %v179
    %v219 = vunpack.c.l.b16 %v180
    %v220 = vunpack.c.l.b16 %v181
    %v221 = vunpack.c.l.b16 %v182
    %v222 = vunpack.c.l.b16 %v183
    %v223 = vunpack.c.l.b16 %v184
    %v224 = vunpack.c.l.b16 %v185
    %v225 = vunpack.c.l.b16 %v186
    %v226 = vunpack.c.l.b16 %v187
    %v227 = vpack.c.b16 %v212, %v211
    %v228 = vpack.c.b16 %v214, %v213
    %v229 = vpack.c.b16 %v216, %v215
    %v230 = vpack.c.b16 %v218, %v217
    %v231 = vpack.c.b16 %v220, %v219
    %v232 = vpack.c.b16 %v222, %v221
    %v233 = vpack.c.b16 %v224, %v223
    %v234 = vpack.c.b16 %v226, %v225
    %243 = vmatprep.subr.bf16.mxu0 0
    %244 = vmatpush1.bf16.msra.mxu0 %v227
    %245 = vmatprep.subr.bf16.mxu0 0
    %246 = vmatpush1.bf16.msra.mxu0 %v228
    %247 = vmatprep.subr.bf16.mxu0 0
    %248 = vmatpush1.bf16.msra.mxu0 %v229
    %249 = vmatprep.subr.bf16.mxu0 0
    %250 = vmatpush1.bf16.msra.mxu0 %v230
    %251 = vmatprep.subr.bf16.mxu0 0
    %252 = vmatpush1.bf16.msra.mxu0 %v231
    %253 = vmatprep.subr.bf16.mxu0 0
    %254 = vmatpush1.bf16.msra.mxu0 %v232
    %255 = vmatprep.subr.bf16.mxu0 0
    %256 = vmatpush1.bf16.msra.mxu0 %v233
    %257 = vmatprep.subr.bf16.mxu0 0
    %258 = vmatpush1.bf16.msra.mxu0 %v234
    %259 = vmatprep.subr.bf16.mxu0 0
    %260 = vmatpush1.bf16.msra.mxu0 0
    %261 = vmatprep.subr.bf16.mxu0 0
    %262 = vmatpush1.bf16.msra.mxu0 0
    %263 = vmatprep.subr.bf16.mxu0 0
    %264 = vmatpush1.bf16.msra.mxu0 0
    %265 = vmatprep.subr.bf16.mxu0 0
    %266 = vmatpush1.bf16.msra.mxu0 0
    %267 = vmatprep.subr.bf16.mxu0 0
    %268 = vmatpush1.bf16.msra.mxu0 0
    %269 = vmatprep.subr.bf16.mxu0 0
    %270 = vmatpush1.bf16.msra.mxu0 0
    %271 = vmatprep.subr.bf16.mxu0 0
    %272 = vmatpush1.bf16.msra.mxu0 0
    %273 = vmatprep.subr.bf16.mxu0 0
    %274 = vmatpush1.bf16.msra.mxu0 0
    %275 = vmatprep.mubr.bf16.mxu0 0
    %276 = vmatmul.mubr.bf16.gmra.mrb[0].mxu0 %v171
    %v277 = vpop.f32.mrb[0].mxu0
    %v278 = vadd.f32 %v193, %v277
    %v279 = vpop.f32.mrb[0].mxu0
    %v280 = vpop.f32.mrb[0].mxu0
    %v281 = vpop.f32.mrb[0].mxu0
    %282 = vdwg.mxu0
    %v283 = vmax.f32 %v278, 0.0
    %v284 = vld [vmem:[%s7] sm:$0x1]
    %v286 = vlaneseq
    %v287 = vshrl.u32 %v286, 7
    %v288 = vsub.s32 0, %v287
    %v289 = vrot.slane %v284, %v288
    %v291 = vmul.f32 %v283, %v289
    %292 = vadd.xlane.f32.xlu0 %v291
    %v293 = vpop.xlane.xlu0 %292
    %v294 = vld [vmem:[#allocation2] sm:$0x1]
    %v296 = vlaneseq
    %v297 = vshrl.u32 %v296, 7
    %v298 = vsub.s32 0, %v297
    %v299 = vrot.slane %v294, %v298
    %v301 = vadd.f32 %v293, %v299
    %vm302 = vcmask 7168
    %303 = vst.msk [vmem:[#allocation7] sm:$0xff] %vm302, %v301
    // Predicated region
    $region46: #{tpu_custom_call.1} parent=1 // pred_check
      _
    $region47: #{tpu_custom_call.1} parent=1 // pred_check_branch
      %305 = sbr.rel (0) target = $region49
    $region48: #{tpu_custom_call.1} parent=1 // pred_region
      // Predicated region
      $region50: #{tpu_custom_call.1} parent=48 // pred_check
        _
      $region51: #{tpu_custom_call.1} parent=48 // pred_check_branch
        %307 = sbr.rel (0) target = $region53
      $region52: #{tpu_custom_call.1} parent=48 // pred_region
        // Predicated region
        $region54: #{tpu_custom_call.1} parent=52 // pred_check
          _
        $region55: #{tpu_custom_call.1} parent=52 // pred_check_branch
          %309 = sbr.rel target = $region57
        $region56: #{tpu_custom_call.1} parent=52 // pred_region
          // Predicated region
          $region69: #{tpu_custom_call.1} parent=56 // pred_check
            _
          $region70: #{tpu_custom_call.1} parent=56 // pred_check_branch
            %324 = sbr.rel (0) target = $region72
          $region71: #{tpu_custom_call.1} parent=56 // pred_region
            loop: start=0, step=1, limit=1
            $region73: #{tpu_custom_call.1} parent=71 // loop_pre_header
              _
            $region74: #{tpu_custom_call.1} parent=71 // loop_header
              %s327 = sphi 0, %s331
              %p328 = scmp.ge.s32.totalorder %s327, 1
              %s332 = sphi [#allocation7], [#allocation7]
              %s333 = sphi %s9, %s9
            $region75: #{tpu_custom_call.1} parent=71 // loop_header_branch
              %330 = sbr.rel (%p328) target = $region79
            $region76: #{tpu_custom_call.1} parent=71 // loop_body
              %v334 = vld [vmem:[%s332] sm:$0x3]
              %335 = vst [vmem:[%s333] sm:$0x3] %v334
            $region77: #{tpu_custom_call.1} parent=71 // loop_footer
              %s331 = sadd.s32 1, %s327
            $region78: #{tpu_custom_call.1} parent=71 // loop_footer_branch
              %326 = sbr.rel target = $region74
            $region79: #{tpu_custom_call.1} parent=71 // loop_exit
              _
          $region72: #{tpu_custom_call.1} parent=56 // pred_fallthru
            _
        $region57: #{tpu_custom_call.1} parent=52 // pred_fallthru
          _
        // Predicated region
        $region58: #{tpu_custom_call.1} parent=52 // pred_check
          _
        $region59: #{tpu_custom_call.1} parent=52 // pred_check_branch
          %311 = sbr.rel (0) target = $region61
        $region60: #{tpu_custom_call.1} parent=52 // pred_region
          loop: start=0, step=1, limit=1
          $region62: #{tpu_custom_call.1} parent=60 // loop_pre_header
            _
          $region63: #{tpu_custom_call.1} parent=60 // loop_header
            %s314 = sphi 0, %s318
            %p315 = scmp.ge.s32.totalorder %s314, 1
            %s319 = sphi [#allocation7], [#allocation7]
            %s320 = sphi %s9, %s9
          $region64: #{tpu_custom_call.1} parent=60 // loop_header_branch
            %317 = sbr.rel (%p315) target = $region68
          $region65: #{tpu_custom_call.1} parent=60 // loop_body
            %v321 = vld [vmem:[%s319] sm:$0x3]
            %322 = vst [vmem:[%s320] sm:$0x3] %v321
          $region66: #{tpu_custom_call.1} parent=60 // loop_footer
            %s318 = sadd.s32 1, %s314
          $region67: #{tpu_custom_call.1} parent=60 // loop_footer_branch
            %313 = sbr.rel target = $region63
          $region68: #{tpu_custom_call.1} parent=60 // loop_exit
            _
        $region61: #{tpu_custom_call.1} parent=52 // pred_fallthru
          _
      $region53: #{tpu_custom_call.1} parent=48 // pred_fallthru
        _
      %336 = vnop
    $region49: #{tpu_custom_call.1} parent=1 // pred_fallthru
      _
    // Predicated region
    $region80: #{tpu_custom_call.1} parent=1 // pred_check
      _
    $region81: #{tpu_custom_call.1} parent=1 // pred_check_branch
      %338 = sbr.rel (0) target = $region83
    $region82: #{tpu_custom_call.1} parent=1 // pred_region
      _
    $region83: #{tpu_custom_call.1} parent=1 // pred_fallthru
      _
    %339 = vsyncpa [#allocation4], 1
    %340 = vsyncpa [#allocation6], 1

</llo_original>
